<compile_context>
chip_gen: v7x
topology: tpu7x:2x2x1
jax: 0.10.0
libtpu: 0.0.40
codegen_flags: <defaults>
</compile_context>

<pallas_src>
import jax
import jax.numpy as jnp
from jax.experimental import pallas as pl
from jax.experimental.pallas import tpu as pltpu


_NEG_BIG = -1e30  # padded-class logit; exp(-1e30 - max) == 0 exactly, no NaN risk


def ensemble_kernel(x_ref, w_ref, b_ref, out_ref):
    """Fused ensemble forward.

    x_ref   : (B_pad, D)        f32
    w_ref   : (D, M * C_pad)    f32  (all members folded, lane-dense)
    b_ref   : (1, M * C_pad)    f32  (padded classes carry -1e30)
    out_ref : (B_pad, C_pad)    f32  averaged + clamped probabilities
    """
    c_pad = out_ref.shape[-1]
    num_members = w_ref.shape[-1] // c_pad

    # One MXU pass over the whole ensemble: (B, D) @ (D, M*C_pad), f32 accumulate.
    logits_all = (
        jnp.dot(x_ref[...], w_ref[...], preferred_element_type=jnp.float32)
        + b_ref[...]
    )

    # Per-member numerically-stable softmax over lane-dense 128-wide chunks.
    # Static slices (128-aligned) -> no relayout; loop is trace-time unrolled.
    acc = jnp.zeros(out_ref.shape, jnp.float32)
    for m in range(num_members):
        logits = logits_all[:, m * c_pad:(m + 1) * c_pad]
        mx = jnp.max(logits, axis=-1, keepdims=True)
        e = jnp.exp(logits - mx)
        # Exact reciprocal so per-member probabilities sum to 1 within 1e-5.
        acc = acc + e * pl.reciprocal(
            jnp.sum(e, axis=-1, keepdims=True), approx=False
        )

    # Average via a precomputed multiply; clamp(min=1e-40).
    # (1e-40 is subnormal in f32; TPU flushes it, matching the JAX reference.)
    avg = acc * jnp.float32(1.0 / num_members)
    out_ref[...] = jnp.maximum(avg, jnp.float32(1e-40)).astype(out_ref.dtype)


def _round_up(n, k):
    return (n + k - 1) // k * k


def ensemble_forward(x, weights, biases):
    """x: (B, D) f32; weights: (M, D, C) f32; biases: (M, 1, C) f32 -> (B, C)."""
    B, D = x.shape
    M, _, C = weights.shape

    # Lane-dense layout: pad class dim to a multiple of 128 and fold the
    # ensemble dim into it; pad batch to a sublane multiple of 8.
    C_pad = _round_up(C, 128)
    B_pad = _round_up(B, 8)

    # Weights: (M, D, C) -> (D, M, C_pad) -> (D, M*C_pad); padded cols are 0.
    w_pad = jnp.pad(weights, ((0, 0), (0, 0), (0, C_pad - C)))
    w_all = jnp.transpose(w_pad, (1, 0, 2)).reshape(D, M * C_pad)
    # Biases: padded classes get a huge negative logit so softmax gives them 0.
    b_pad = jnp.pad(
        biases, ((0, 0), (0, 0), (0, C_pad - C)), constant_values=_NEG_BIG
    )
    b_all = b_pad.reshape(1, M * C_pad)

    x_pad = jnp.pad(x, ((0, B_pad - B), (0, 0)))

    cost = pl.CostEstimate(
        flops=2 * B_pad * D * M * C_pad,
        transcendentals=B_pad * M * C_pad,
        bytes_accessed=4 * (x_pad.size + w_all.size + b_all.size + B_pad * C_pad),
    )

    out = pl.pallas_call(
        ensemble_kernel,
        out_shape=jax.ShapeDtypeStruct((B_pad, C_pad), jnp.float32),
        in_specs=[
            pl.BlockSpec(memory_space=pltpu.MemorySpace.VMEM),
            pl.BlockSpec(memory_space=pltpu.MemorySpace.VMEM),
            pl.BlockSpec(memory_space=pltpu.MemorySpace.VMEM),
        ],
        out_specs=pl.BlockSpec(memory_space=pltpu.MemorySpace.VMEM),
        cost_estimate=cost,
    )(x_pad, w_all, b_all)

    return out[:B, :C]


def ensemble_forward_ref(x, weights, biases):
    """Pure-JAX reference matching the PyTorch semantics."""
    logits = jnp.einsum("bd,mdc->mbc", x, weights) + biases  # (M, B, C)
    probs = jax.nn.softmax(logits, axis=-1)
    out = jnp.mean(probs, axis=0)
    return jnp.maximum(out, 1e-40)


if __name__ == "__main__":
    # Small, deterministic setup: 3 ensemble members, batch=8, features=32, classes=16.
    M, B, D, C = 3, 8, 32, 16
    key = jax.random.PRNGKey(0)
    kx, kw, kb = jax.random.split(key, 3)

    x = jax.random.normal(kx, (B, D), dtype=jnp.float32)
    weights = 0.1 * jax.random.normal(kw, (M, D, C), dtype=jnp.float32)
    biases = 0.05 * jax.random.normal(kb, (M, 1, C), dtype=jnp.float32)

    out = ensemble_forward(x, weights, biases)
    out = jax.block_until_ready(out)

    ref = ensemble_forward_ref(x, weights, biases)
    assert out.shape == (B, C)
    assert jnp.allclose(out, ref, atol=1e-5, rtol=1e-5), "mismatch vs reference"

    print("KERNEL_OK")
</pallas_src>

<mosaic_0001>
module attributes {stable_mosaic.version = 11 : i64} {
  func.func @ensemble_kernel(%arg0: memref<8x32xf32, #tpu.memory_space<vmem>>, %arg1: memref<32x384xf32, #tpu.memory_space<vmem>>, %arg2: memref<1x384xf32, #tpu.memory_space<vmem>>, %arg3: memref<8x128xf32, #tpu.memory_space<vmem>>) attributes {dimension_semantics = [], scalar_prefetch = 0 : i64, scratch_operands = 0 : i64, tpu.core_type = #tpu.core_type<tc>} {
    %c0 = arith.constant 0 : index
    %c0_0 = arith.constant 0 : index
    %0 = vector.load %arg0[%c0, %c0_0] : memref<8x32xf32, #tpu.memory_space<vmem>>, vector<8x32xf32>
    %c0_1 = arith.constant 0 : index
    %c0_2 = arith.constant 0 : index
    %1 = vector.load %arg1[%c0_1, %c0_2] : memref<32x384xf32, #tpu.memory_space<vmem>>, vector<32x384xf32>
    %cst = arith.constant dense<0.000000e+00> : vector<8x384xf32>
    %2 = tpu.matmul %0, %1, %cst {dimension_numbers = #tpu.dot_dimension_numbers<[1], [0], [0], [1], [0, 0, 1, 1], [], []>} : vector<8x32xf32>, vector<32x384xf32>, vector<8x384xf32> -> vector<8x384xf32>
    %c0_3 = arith.constant 0 : index
    %c0_4 = arith.constant 0 : index
    %3 = vector.load %arg2[%c0_3, %c0_4] : memref<1x384xf32, #tpu.memory_space<vmem>>, vector<1x384xf32>
    %4 = vector.broadcast %3 : vector<1x384xf32> to vector<8x384xf32>
    %5 = arith.addf %2, %4 : vector<8x384xf32>
    %cst_5 = arith.constant 0.000000e+00 : f32
    %6 = vector.broadcast %cst_5 : f32 to vector<8x128xf32>
    %7 = vector.extract_strided_slice %5 {offsets = [0, 0], sizes = [8, 128], strides = [1, 1]} : vector<8x384xf32> to vector<8x128xf32>
    %cst_6 = arith.constant dense<0xFF800000> : vector<8xf32>
    %8 = vector.multi_reduction <maximumf>, %7, %cst_6 [1] : vector<8x128xf32> to vector<8xf32>
    %9 = vector.shape_cast %8 : vector<8xf32> to vector<8x1xf32>
    %10 = vector.broadcast %9 : vector<8x1xf32> to vector<8x128xf32>
    %11 = arith.subf %7, %10 : vector<8x128xf32>
    %12 = math.exp %11 : vector<8x128xf32>
    %cst_7 = arith.constant dense<0.000000e+00> : vector<8xf32>
    %13 = vector.multi_reduction <add>, %12, %cst_7 [1] : vector<8x128xf32> to vector<8xf32>
    %14 = vector.shape_cast %13 : vector<8xf32> to vector<8x1xf32>
    %15 = tpu.reciprocal %14 : vector<8x1xf32> -> vector<8x1xf32>
    %16 = vector.broadcast %15 : vector<8x1xf32> to vector<8x128xf32>
    %17 = arith.mulf %12, %16 : vector<8x128xf32>
    %18 = arith.addf %6, %17 : vector<8x128xf32>
    %19 = vector.extract_strided_slice %5 {offsets = [0, 128], sizes = [8, 128], strides = [1, 1]} : vector<8x384xf32> to vector<8x128xf32>
    %cst_8 = arith.constant dense<0xFF800000> : vector<8xf32>
    %20 = vector.multi_reduction <maximumf>, %19, %cst_8 [1] : vector<8x128xf32> to vector<8xf32>
    %21 = vector.shape_cast %20 : vector<8xf32> to vector<8x1xf32>
    %22 = vector.broadcast %21 : vector<8x1xf32> to vector<8x128xf32>
    %23 = arith.subf %19, %22 : vector<8x128xf32>
    %24 = math.exp %23 : vector<8x128xf32>
    %cst_9 = arith.constant dense<0.000000e+00> : vector<8xf32>
    %25 = vector.multi_reduction <add>, %24, %cst_9 [1] : vector<8x128xf32> to vector<8xf32>
    %26 = vector.shape_cast %25 : vector<8xf32> to vector<8x1xf32>
    %27 = tpu.reciprocal %26 : vector<8x1xf32> -> vector<8x1xf32>
    %28 = vector.broadcast %27 : vector<8x1xf32> to vector<8x128xf32>
    %29 = arith.mulf %24, %28 : vector<8x128xf32>
    %30 = arith.addf %18, %29 : vector<8x128xf32>
    %31 = vector.extract_strided_slice %5 {offsets = [0, 256], sizes = [8, 128], strides = [1, 1]} : vector<8x384xf32> to vector<8x128xf32>
    %cst_10 = arith.constant dense<0xFF800000> : vector<8xf32>
    %32 = vector.multi_reduction <maximumf>, %31, %cst_10 [1] : vector<8x128xf32> to vector<8xf32>
    %33 = vector.shape_cast %32 : vector<8xf32> to vector<8x1xf32>
    %34 = vector.broadcast %33 : vector<8x1xf32> to vector<8x128xf32>
    %35 = arith.subf %31, %34 : vector<8x128xf32>
    %36 = math.exp %35 : vector<8x128xf32>
    %cst_11 = arith.constant dense<0.000000e+00> : vector<8xf32>
    %37 = vector.multi_reduction <add>, %36, %cst_11 [1] : vector<8x128xf32> to vector<8xf32>
    %38 = vector.shape_cast %37 : vector<8xf32> to vector<8x1xf32>
    %39 = tpu.reciprocal %38 : vector<8x1xf32> -> vector<8x1xf32>
    %40 = vector.broadcast %39 : vector<8x1xf32> to vector<8x128xf32>
    %41 = arith.mulf %36, %40 : vector<8x128xf32>
    %42 = arith.addf %30, %41 : vector<8x128xf32>
    %cst_12 = arith.constant 0.333333343 : f32
    %43 = vector.broadcast %cst_12 : f32 to vector<8x128xf32>
    %44 = arith.mulf %42, %43 : vector<8x128xf32>
    %cst_13 = arith.constant 9.999940e-41 : f32
    %45 = vector.broadcast %cst_13 : f32 to vector<8x128xf32>
    %46 = arith.maximumf %44, %45 : vector<8x128xf32>
    %c0_14 = arith.constant 0 : index
    %c0_15 = arith.constant 0 : index
    %47 = vector.load %arg3[%c0_14, %c0_15] : memref<8x128xf32, #tpu.memory_space<vmem>>, vector<8x128xf32>
    tpu.vector_store %arg3[%c0_14, %c0_15], %46 {strides = array<i32>} : memref<8x128xf32, #tpu.memory_space<vmem>>, vector<8x128xf32>,
    return
  }
}

</mosaic_0001>

<llo_original>
// kernel: tpu_custom_call.1
$region0: #{tpu_custom_call.1}
  #allocation0 [shape = 'u32[]', space=smem, size = 0x4, offset = 0x4, fixed_abs, tag = 'smem constant byte address 0x4 - core index']
  #allocation1 [shape = 'u32[144,128]{1,0:T(1,128)}', space=vmem, size = 0x12000, scoped, tag = 'internal scratch']
  %s0 = inlined_call_operand.hbm [shape: f32[8,32], index: 0, kind: input, shape index: {}]
  %s1 = inlined_call_operand.hbm [shape: f32[32,384], index: 1, kind: input, shape index: {}]
  %s2 = inlined_call_operand.vmem [shape: f32[1,384], index: 2, kind: input, shape index: {}]
  %s3 = inlined_call_operand.hbm [shape: f32[8,128], index: 3, kind: output, shape index: {}]
  %s4 = sld [smem:[#allocation0]]
  $region30: #{tpu_custom_call.1} parent=0
    _
  %s6 = ssub.s32 1, %s4
  %s7 = scalar_select 0, %s6, %s4
  $region1: #{tpu_custom_call.1} parent=0
    #allocation2 [shape = 'u8[4096]{0}', space=vmem, size = 0x1000, scoped, tag = 'input window, operand 0, single buffered']
    #allocation3 [shape = 's32[1]{0}', space=sflag, size = 0x4, scoped, tag = 'scoped memory for tpu_custom_call.1']
    #allocation4 [shape = 's32[1]{0}', space=sflag, size = 0x4, scoped, tag = 'scoped memory for tpu_custom_call.1']
    #allocation5 [shape = 'u8[49152]{0}', space=vmem, size = 0xc000, scoped, tag = 'input window, operand 1, single buffered']
    #allocation6 [shape = 's32[1]{0}', space=sflag, size = 0x4, scoped, tag = 'scoped memory for tpu_custom_call.1']
    #allocation7 [shape = 'u8[4096]{0}', space=vmem, size = 0x1000, scoped, tag = 'output window, operand 0, single buffered']
    %8 = vsyncpa [#allocation3], 0
    %9 = vsyncpa [#allocation6], 0
    %10 = vsyncpa [#allocation4], 0
    // Predicated region
    $region2: #{tpu_custom_call.1} parent=1 // pred_check
      _
    $region3: #{tpu_custom_call.1} parent=1 // pred_check_branch
      %12 = sbr.rel (0) target = $region5
    $region4: #{tpu_custom_call.1} parent=1 // pred_region
      %s14 = ssub.s32 128, 128
      %15 = vsyncadd [#allocation3], %s14
      %s17 = sshll.u32 [#allocation2], 4
      %s18 = int_to_ptr.vmem [resolvable:$true] %s17
      %20 = dma.hbm_to_vmem [thread:$0]  %s0, 128, %s18, [#allocation3]
    $region5: #{tpu_custom_call.1} parent=1 // pred_fallthru
      _
    // Predicated region
    $region6: #{tpu_custom_call.1} parent=1 // pred_check
      _
    $region7: #{tpu_custom_call.1} parent=1 // pred_check_branch
      %22 = sbr.rel (0) target = $region9
    $region8: #{tpu_custom_call.1} parent=1 // pred_region
      %s24 = ssub.s32 1536, 1536
      %25 = vsyncadd [#allocation6], %s24
      %s26 = sshll.u32 [#allocation5], 4
      %s27 = int_to_ptr.vmem [resolvable:$true] %s26
      %32 = dma.hbm_to_vmem [thread:$0]  %s1, 1536, %s27, [#allocation6], 384, 384, 24
    $region9: #{tpu_custom_call.1} parent=1 // pred_fallthru
      _
    // Predicated region
    $region10: #{tpu_custom_call.1} parent=1 // pred_check
      _
    $region11: #{tpu_custom_call.1} parent=1 // pred_check_branch
      %34 = sbr.rel (0) target = $region13
    $region12: #{tpu_custom_call.1} parent=1 // pred_region
      _
    $region13: #{tpu_custom_call.1} parent=1 // pred_fallthru
      _
    // Predicated region
    $region14: #{tpu_custom_call.1} parent=1 // pred_check
      _
    $region15: #{tpu_custom_call.1} parent=1 // pred_check_branch
      %36 = sbr.rel (0) target = $region17
    $region16: #{tpu_custom_call.1} parent=1 // pred_region
      %37 = dma.done [#allocation3], 128
    $region17: #{tpu_custom_call.1} parent=1 // pred_fallthru
      _
    // Predicated region
    $region18: #{tpu_custom_call.1} parent=1 // pred_check
      _
    $region19: #{tpu_custom_call.1} parent=1 // pred_check_branch
      %39 = sbr.rel (0) target = $region21
    $region20: #{tpu_custom_call.1} parent=1 // pred_region
      %40 = dma.done [#allocation6], 1536
    $region21: #{tpu_custom_call.1} parent=1 // pred_fallthru
      _
    %v41 = vld [vmem:[#allocation2] sm:$0xff]
    %v42 = vld [vmem:[#allocation5] sm:$0xff]
    %v43 = vld [vmem:[#allocation5 + $0x8] sm:$0xff]
    %v44 = vld [vmem:[#allocation5 + $0x10] sm:$0xff]
    %v45 = vld [vmem:[#allocation5 + $0x18] sm:$0xff]
    %v46 = vld [vmem:[#allocation5 + $0x20] sm:$0xff]
    %v47 = vld [vmem:[#allocation5 + $0x28] sm:$0xff]
    %v48 = vld [vmem:[#allocation5 + $0x30] sm:$0xff]
    %v49 = vld [vmem:[#allocation5 + $0x38] sm:$0xff]
    %v50 = vld [vmem:[#allocation5 + $0x40] sm:$0xff]
    %v51 = vld [vmem:[#allocation5 + $0x48] sm:$0xff]
    %v52 = vld [vmem:[#allocation5 + $0x50] sm:$0xff]
    %v53 = vld [vmem:[#allocation5 + $0x58] sm:$0xff]
    %v54 = vld [vmem:[%s2] sm:$0x7]
    %v56 = vlaneseq
    %v57 = vshrl.u32 %v56, 7
    %v58 = vsub.s32 0, %v57
    %v59 = vrot.slane %v54, %v58
    %v60 = vlaneseq
    %v61 = vshrl.u32 %v60, 7
    %v62 = vsub.s32 1, %v61
    %v63 = vrot.slane %v54, %v62
    %v64 = vlaneseq
    %v65 = vshrl.u32 %v64, 7
    %v66 = vsub.s32 2, %v65
    %v67 = vrot.slane %v54, %v66
    %vm71 = vcmask 261120
    %v73 = vsel %vm71, %v41, 0
    %75 = vmatprep.subr.mxu0 %v43
    %76 = vmatpush1.msra.mxu0 %v42
    %77 = vmatprep.subr.mxu0 %v46
    %78 = vmatpush1.msra.mxu0 %v45
    %79 = vmatprep.subr.mxu0 %v49
    %80 = vmatpush1.msra.mxu0 %v48
    %81 = vmatprep.subr.mxu0 %v52
    %82 = vmatpush1.msra.mxu0 %v51
    %83 = vmatprep.subr.mxu0 0.0
    %84 = vmatpush1.msra.mxu0 0.0
    %85 = vmatprep.subr.mxu0 0.0
    %86 = vmatpush1.msra.mxu0 0.0
    %87 = vmatprep.subr.mxu0 0.0
    %88 = vmatpush1.msra.mxu0 0.0
    %89 = vmatprep.subr.mxu0 0.0
    %90 = vmatpush1.msra.mxu0 0.0
    %91 = vmatprep.subr.mxu0 0.0
    %92 = vmatpush1.msra.mxu0 0.0
    %93 = vmatprep.subr.mxu0 0.0
    %94 = vmatpush1.msra.mxu0 0.0
    %95 = vmatprep.subr.mxu0 0.0
    %96 = vmatpush1.msra.mxu0 0.0
    %97 = vmatprep.subr.mxu0 0.0
    %98 = vmatpush1.msra.mxu0 0.0
    %99 = vmatprep.subr.mxu0 0.0
    %100 = vmatpush1.msra.mxu0 0.0
    %101 = vmatprep.subr.mxu0 0.0
    %102 = vmatpush1.msra.mxu0 0.0
    %103 = vmatprep.subr.mxu0 0.0
    %104 = vmatpush1.msra.mxu0 0.0
    %105 = vmatprep.subr.mxu0 0.0
    %106 = vmatpush1.msra.mxu0 0.0
    %107 = vmatprep.subr.mxu0 0.0
    %108 = vmatpush1.msra.mxu0 0.0
    %109 = vmatprep.subr.mxu0 0.0
    %110 = vmatpush1.msra.mxu0 0.0
    %111 = vmatprep.subr.mxu0 0.0
    %112 = vmatpush1.msra.mxu0 0.0
    %113 = vmatprep.subr.mxu0 0.0
    %114 = vmatpush1.msra.mxu0 0.0
    %115 = vmatprep.subr.mxu0 0.0
    %116 = vmatpush1.msra.mxu0 0.0
    %117 = vmatprep.subr.mxu0 0.0
    %118 = vmatpush1.msra.mxu0 0.0
    %119 = vmatprep.subr.mxu0 0.0
    %120 = vmatpush1.msra.mxu0 0.0
    %121 = vmatprep.subr.mxu0 0.0
    %122 = vmatpush1.msra.mxu0 0.0
    %123 = vmatprep.subr.mxu0 0.0
    %124 = vmatpush1.msra.mxu0 0.0
    %125 = vmatprep.subr.mxu0 0.0
    %126 = vmatpush1.msra.mxu0 0.0
    %127 = vmatprep.subr.mxu0 0.0
    %128 = vmatpush1.msra.mxu0 0.0
    %129 = vmatprep.subr.mxu0 0.0
    %130 = vmatpush1.msra.mxu0 0.0
    %131 = vmatprep.subr.mxu0 0.0
    %132 = vmatpush1.msra.mxu0 0.0
    %133 = vmatprep.subr.mxu0 0.0
    %134 = vmatpush1.msra.mxu0 0.0
    %135 = vmatprep.subr.mxu0 0.0
    %136 = vmatpush1.msra.mxu0 0.0
    %137 = vmatprep.subr.mxu0 0.0
    %138 = vmatpush1.msra.mxu0 0.0
    %139 = vmatprep.mubr.f32.mxu0 0.0
    %140 = vmatmul.mubr.f32.gmra.mrb[0].mxu0 %v73
    %v141 = vpop.f32.mrb[0].mxu0
    %v142 = vadd.f32 %v59, %v141
    %v143 = vpop.f32.mrb[0].mxu0
    %v144 = vadd.f32 %v63, %v143
    %145 = vdwg.mxu0
    %146 = vmatprep.subr.mxu0 0.0
    %147 = vmatpush1.msra.mxu0 %v44
    %148 = vmatprep.subr.mxu0 0.0
    %149 = vmatpush1.msra.mxu0 %v47
    %150 = vmatprep.subr.mxu0 0.0
    %151 = vmatpush1.msra.mxu0 %v50
    %152 = vmatprep.subr.mxu0 0.0
    %153 = vmatpush1.msra.mxu0 %v53
    %154 = vmatprep.subr.mxu0 0.0
    %155 = vmatpush1.msra.mxu0 0.0
    %156 = vmatprep.subr.mxu0 0.0
    %157 = vmatpush1.msra.mxu0 0.0
    %158 = vmatprep.subr.mxu0 0.0
    %159 = vmatpush1.msra.mxu0 0.0
    %160 = vmatprep.subr.mxu0 0.0
    %161 = vmatpush1.msra.mxu0 0.0
    %162 = vmatprep.subr.mxu0 0.0
    %163 = vmatpush1.msra.mxu0 0.0
    %164 = vmatprep.subr.mxu0 0.0
    %165 = vmatpush1.msra.mxu0 0.0
    %166 = vmatprep.subr.mxu0 0.0
    %167 = vmatpush1.msra.mxu0 0.0
    %168 = vmatprep.subr.mxu0 0.0
    %169 = vmatpush1.msra.mxu0 0.0
    %170 = vmatprep.subr.mxu0 0.0
    %171 = vmatpush1.msra.mxu0 0.0
    %172 = vmatprep.subr.mxu0 0.0
    %173 = vmatpush1.msra.mxu0 0.0
    %174 = vmatprep.subr.mxu0 0.0
    %175 = vmatpush1.msra.mxu0 0.0
    %176 = vmatprep.subr.mxu0 0.0
    %177 = vmatpush1.msra.mxu0 0.0
    %178 = vmatprep.subr.mxu0 0.0
    %179 = vmatpush1.msra.mxu0 0.0
    %180 = vmatprep.subr.mxu0 0.0
    %181 = vmatpush1.msra.mxu0 0.0
    %182 = vmatprep.subr.mxu0 0.0
    %183 = vmatpush1.msra.mxu0 0.0
    %184 = vmatprep.subr.mxu0 0.0
    %185 = vmatpush1.msra.mxu0 0.0
    %186 = vmatprep.subr.mxu0 0.0
    %187 = vmatpush1.msra.mxu0 0.0
    %188 = vmatprep.subr.mxu0 0.0
    %189 = vmatpush1.msra.mxu0 0.0
    %190 = vmatprep.subr.mxu0 0.0
    %191 = vmatpush1.msra.mxu0 0.0
    %192 = vmatprep.subr.mxu0 0.0
    %193 = vmatpush1.msra.mxu0 0.0
    %194 = vmatprep.subr.mxu0 0.0
    %195 = vmatpush1.msra.mxu0 0.0
    %196 = vmatprep.subr.mxu0 0.0
    %197 = vmatpush1.msra.mxu0 0.0
    %198 = vmatprep.subr.mxu0 0.0
    %199 = vmatpush1.msra.mxu0 0.0
    %200 = vmatprep.subr.mxu0 0.0
    %201 = vmatpush1.msra.mxu0 0.0
    %202 = vmatprep.subr.mxu0 0.0
    %203 = vmatpush1.msra.mxu0 0.0
    %204 = vmatprep.subr.mxu0 0.0
    %205 = vmatpush1.msra.mxu0 0.0
    %206 = vmatprep.subr.mxu0 0.0
    %207 = vmatpush1.msra.mxu0 0.0
    %208 = vmatprep.subr.mxu0 0.0
    %209 = vmatpush1.msra.mxu0 0.0
    %210 = vmatprep.mubr.f32.mxu0 0.0
    %211 = vmatmul.mubr.f32.gmra.mrb[0].mxu0 %v73
    %v212 = vpop.f32.mrb[0].mxu0
    %v213 = vadd.f32 %v67, %v212
    %v214 = vpop.f32.mrb[0].mxu0
    %215 = vdwg.mxu0
    %216 = vmax.xlane.f32.xlu0 %v142
    %v217 = vpop.xlane.xlu0 %216
    %v218 = vsub.f32 %v142, %v217
    %v219 = vmul.f32 %v218, 1.442695
    %v220 = vpow.pop %v219
    %221 = vadd.xlane.f32.xlu0 %v220
    %v222 = vpop.xlane.xlu0 %221
    %v223 = vrcp.pop %v222
    %v224 = vmul.f32 %v220, %v223
    %v225 = vadd.f32 %v224, 0.0
    %226 = vmax.xlane.f32.xlu0 %v144
    %v227 = vpop.xlane.xlu0 %226
    %v228 = vsub.f32 %v144, %v227
    %v229 = vmul.f32 %v228, 1.442695
    %v230 = vpow.pop %v229
    %231 = vadd.xlane.f32.xlu0 %v230
    %v232 = vpop.xlane.xlu0 %231
    %v233 = vrcp.pop %v232
    %v234 = vmul.f32 %v230, %v233
    %v235 = vadd.f32 %v225, %v234
    %236 = vmax.xlane.f32.xlu0 %v213
    %v237 = vpop.xlane.xlu0 %236
    %v238 = vsub.f32 %v213, %v237
    %v239 = vmul.f32 %v238, 1.442695
    %v240 = vpow.pop %v239
    %241 = vadd.xlane.f32.xlu0 %v240
    %v242 = vpop.xlane.xlu0 %241
    %v243 = vrcp.pop %v242
    %v244 = vmul.f32 %v240, %v243
    %v245 = vadd.f32 %v235, %v244
    %v246 = vmul.f32 %v245, 0.33333334
    %v247 = vmax.f32 %v246, 1e-40
    %248 = vst [vmem:[#allocation7] sm:$0xff] %v247
    // Predicated region
    $region22: #{tpu_custom_call.1} parent=1 // pred_check
      _
    $region23: #{tpu_custom_call.1} parent=1 // pred_check_branch
      %250 = sbr.rel (0) target = $region25
    $region24: #{tpu_custom_call.1} parent=1 // pred_region
      %s252 = ssub.s32 128, 128
      %253 = vsyncadd [#allocation4], %s252
      %s255 = sshll.u32 [#allocation7], 4
      %s256 = int_to_ptr.vmem [resolvable:$true] %s255
      %258 = dma.vmem_to_hbm [thread:$0]  %s256, 128, %s3, [#allocation4]
    $region25: #{tpu_custom_call.1} parent=1 // pred_fallthru
      _
    // Predicated region
    $region26: #{tpu_custom_call.1} parent=1 // pred_check
      _
    $region27: #{tpu_custom_call.1} parent=1 // pred_check_branch
      %260 = sbr.rel (0) target = $region29
    $region28: #{tpu_custom_call.1} parent=1 // pred_region
      %261 = dma.done [#allocation4], 128
    $region29: #{tpu_custom_call.1} parent=1 // pred_fallthru
      _
    %262 = vsyncpa [#allocation3], 1
    %263 = vsyncpa [#allocation6], 1
    %264 = vsyncpa [#allocation4], 1

</llo_original>
